<compile_context>
chip_gen: v7x
topology: tpu7x:2x2x1
jax: 0.10.0
libtpu: 0.0.40
codegen_flags: <defaults>
</compile_context>

<pallas_src>
import functools

import jax
import jax.numpy as jnp
from jax.experimental import pallas as pl
from jax.experimental.pallas import tpu as pltpu


LAYERNORM_EPS = 1e-12


def _round_up(n: int, m: int) -> int:
    return ((n + m - 1) // m) * m


def _res_fc_kernel(x_ref, w_ref, b_ref, g_ref, beta_ref, o_ref, *,
                   hidden, hidden_pad, matmul_dtype):
    """One (TM, Hp) token tile: y = relu(x @ W.T + b); out = LayerNorm(x + y)."""
    x = x_ref[...]                                     # (TM, Hp), input dtype

    # Dense layer on the MXU: contract the 'in' axis of both operands
    # (dimension_numbers ((1,),(1,))) so the wrapper never materializes W.T in
    # HBM. Operands are bf16, accumulation is f32.
    y = jax.lax.dot_general(
        x.astype(matmul_dtype), w_ref[...],
        dimension_numbers=(((1,), (1,)), ((), ())),
        preferred_element_type=jnp.float32)
    y = y + b_ref[...]                                 # (1, Hp) bias broadcast

    # TODO(synk): dropout is identity in eval mode; training-mode stochastic
    # masking (pltpu.prng_seed / prng_random_bits) intentionally omitted.
    y = jnp.maximum(y, 0.0)                            # ReLU (VPU)

    # Residual + LayerNorm over the *real* hidden columns. Padded columns of
    # x / W / bias are zero, so h is exactly zero there; only the variance term
    # needs an explicit mask (centered padding columns would hold -mean).
    h = x.astype(jnp.float32) + y
    inv_h = 1.0 / hidden
    mean = jnp.sum(h, axis=-1, keepdims=True) * inv_h
    centered = h - mean
    if hidden != hidden_pad:
        col = jax.lax.broadcasted_iota(jnp.int32, h.shape, 1)
        centered_valid = jnp.where(col < hidden, centered, 0.0)
    else:
        centered_valid = centered
    var = jnp.sum(centered_valid * centered_valid, axis=-1, keepdims=True) * inv_h
    normed = centered * jax.lax.rsqrt(var + LAYERNORM_EPS)
    out = normed * g_ref[...] + beta_ref[...]          # padded gamma/beta are 0
    o_ref[...] = out.astype(o_ref.dtype)


def res_fc_hidden_linear(x, weight, bias, gamma, beta, *,
                         tile_rows=256, matmul_dtype=jnp.bfloat16):
    """x: (N, H) tokens; weight: (H, H) PyTorch Linear weight, (out, in) layout."""
    n_tokens, hidden = x.shape
    assert weight.shape == (hidden, hidden)

    # Lane-dense padding of the hidden axis (multiple of 128) so stores are
    # unmasked full-vreg ops; pad the token axis so the grid tiles evenly.
    hp = _round_up(hidden, 128)
    tm = min(int(tile_rows), _round_up(n_tokens, 8))
    n_pad = _round_up(n_tokens, tm)

    xp = x
    if n_pad != n_tokens or hp != hidden:
        xp = jnp.pad(x, ((0, n_pad - n_tokens), (0, hp - hidden)))
    wp = weight if hp == hidden else jnp.pad(
        weight, ((0, hp - hidden), (0, hp - hidden)))
    wp = wp.astype(matmul_dtype)       # bf16: halves weight HBM read + VMEM residency
    bp = jnp.pad(bias.astype(jnp.float32), (0, hp - hidden)).reshape(1, hp)
    gp = jnp.pad(gamma.astype(jnp.float32), (0, hp - hidden)).reshape(1, hp)
    betap = jnp.pad(beta.astype(jnp.float32), (0, hp - hidden)).reshape(1, hp)

    # VMEM budget: x/out tiles are double-buffered, the weight and per-feature
    # vectors are single-buffered residents (constant block index).
    x_bytes = jnp.dtype(x.dtype).itemsize
    w_bytes = jnp.dtype(matmul_dtype).itemsize
    vmem_est = (2 * tm * hp * x_bytes          # x tiles (double-buffered)
                + 2 * tm * hp * x_bytes        # out tiles (double-buffered)
                + hp * hp * w_bytes            # resident weight (single-buffered)
                + 3 * hp * 4)                  # bias / gamma / beta
    # Raise the scoped-VMEM limit above the 16/32 MiB defaults. On v7x (64 MiB
    # physical) keep vmem_est well under ~56 MiB by shrinking tile_rows.
    vmem_limit = max(vmem_est + (8 << 20), 48 << 20)

    # TODO(synk): for v7x with very large hidden (bf16 weight >~32 MiB, i.e.
    # H >~ 5.5k), add a second grid axis over output-column tiles with the
    # (tm, hp) output block resident across it and the ReLU+residual+LayerNorm
    # epilogue under pl.when(last column), so the full weight never has to be
    # VMEM-resident. Not needed at the hidden sizes this module is used with.

    kernel = functools.partial(_res_fc_kernel, hidden=hidden, hidden_pad=hp,
                               matmul_dtype=matmul_dtype)
    resident = pl.Buffered(1)   # constant index_map -> no double buffering

    out = pl.pallas_call(
        kernel,
        out_shape=jax.ShapeDtypeStruct((n_pad, hp), x.dtype),
        grid_spec=pltpu.PrefetchScalarGridSpec(
            num_scalar_prefetch=0,
            grid=(n_pad // tm,),
            in_specs=[
                pl.BlockSpec((tm, hp), lambda i: (i, 0)),                           # x tile
                pl.BlockSpec((hp, hp), lambda i: (0, 0), pipeline_mode=resident),   # W (out,in)
                pl.BlockSpec((1, hp), lambda i: (0, 0), pipeline_mode=resident),    # bias
                pl.BlockSpec((1, hp), lambda i: (0, 0), pipeline_mode=resident),    # gamma
                pl.BlockSpec((1, hp), lambda i: (0, 0), pipeline_mode=resident),    # beta
            ],
            out_specs=pl.BlockSpec((tm, hp), lambda i: (i, 0)),
        ),
        compiler_params=pltpu.CompilerParams(
            dimension_semantics=("parallel",),
            vmem_limit_bytes=int(vmem_limit),
        ),
    )(xp, wp, bp, gp, betap)

    if n_pad != n_tokens or hp != hidden:
        out = out[:n_tokens, :hidden]
    return out


def _reference(x, weight, bias, gamma, beta, *, matmul_dtype=jnp.float32):
    y = jnp.dot(x.astype(matmul_dtype), weight.T.astype(matmul_dtype),
                preferred_element_type=jnp.float32) + bias
    y = jnp.maximum(y, 0.0)
    h = x.astype(jnp.float32) + y
    mean = jnp.mean(h, axis=-1, keepdims=True)
    var = jnp.mean((h - mean) ** 2, axis=-1, keepdims=True)
    out = (h - mean) / jnp.sqrt(var + LAYERNORM_EPS) * gamma + beta
    return out.astype(x.dtype)


if __name__ == "__main__":
    key = jax.random.PRNGKey(0)
    batch, seq, hidden = 2, 8, 32          # double=False -> float32
    k1, k2, k3 = jax.random.split(key, 3)

    # Deterministic synthetic parameters (PyTorch Linear-like init scale).
    hidden_states = jax.random.normal(k1, (batch, seq, hidden), jnp.float32)
    bound = 1.0 / jnp.sqrt(hidden)
    weight = jax.random.uniform(k2, (hidden, hidden), jnp.float32, -bound, bound)
    bias = jax.random.uniform(k3, (hidden,), jnp.float32, -bound, bound)
    gamma = jnp.ones((hidden,), jnp.float32)     # LayerNorm init
    beta = jnp.zeros((hidden,), jnp.float32)

    x2d = hidden_states.reshape(batch * seq, hidden)
    out = res_fc_hidden_linear(x2d, weight, bias, gamma, beta)
    out = out.reshape(batch, seq, hidden)
    jax.block_until_ready(out)

    # Tight check vs. a reference that uses the same bf16 matmul operands.
    ref_bf16 = _reference(hidden_states, weight, bias, gamma, beta,
                          matmul_dtype=jnp.bfloat16)
    assert jnp.allclose(out, ref_bf16, atol=1e-4, rtol=1e-3), \
        "mismatch vs bf16-matmul reference"
    # Sanity check vs. full-f32 math (bf16 matmul rounding is bounded).
    ref_f32 = _reference(hidden_states, weight, bias, gamma, beta,
                         matmul_dtype=jnp.float32)
    assert jnp.allclose(out, ref_f32, atol=5e-2, rtol=5e-2), \
        "mismatch vs f32 reference"

    print("KERNEL_OK")
</pallas_src>

<mosaic_0001>
module attributes {stable_mosaic.version = 11 : i64} {
  func.func @_res_fc_kernel(%arg0: i32, %arg1: memref<16x128xf32, #tpu.memory_space<vmem>>, %arg2: memref<128x128xbf16, #tpu.memory_space<vmem>>, %arg3: memref<1x128xf32, #tpu.memory_space<vmem>>, %arg4: memref<1x128xf32, #tpu.memory_space<vmem>>, %arg5: memref<1x128xf32, #tpu.memory_space<vmem>>, %arg6: memref<16x128xf32, #tpu.memory_space<vmem>>) attributes {dimension_semantics = [#tpu.dimension_semantics<parallel>], iteration_bounds = array<i64: 1>, scalar_prefetch = 0 : i64, scratch_operands = 0 : i64, tpu.core_type = #tpu.core_type<tc>, window_params = [{transform_indices = @transform_0, window_bounds = array<i64: 16, 128>}, {pipeline_mode = #tpu.pipeline_mode<synchronous>, transform_indices = @transform_1, window_bounds = array<i64: 128, 128>}, {pipeline_mode = #tpu.pipeline_mode<synchronous>, transform_indices = @transform_2, window_bounds = array<i64: 1, 128>}, {pipeline_mode = #tpu.pipeline_mode<synchronous>, transform_indices = @transform_3, window_bounds = array<i64: 1, 128>}, {pipeline_mode = #tpu.pipeline_mode<synchronous>, transform_indices = @transform_4, window_bounds = array<i64: 1, 128>}, {transform_indices = @transform_5, window_bounds = array<i64: 16, 128>}]} {
    %c0 = arith.constant 0 : index
    %c0_0 = arith.constant 0 : index
    %0 = vector.load %arg1[%c0, %c0_0] : memref<16x128xf32, #tpu.memory_space<vmem>>, vector<16x128xf32>
    %1 = arith.truncf %0 : vector<16x128xf32> to vector<16x128xbf16>
    %c0_1 = arith.constant 0 : index
    %c0_2 = arith.constant 0 : index
    %2 = vector.load %arg2[%c0_1, %c0_2] : memref<128x128xbf16, #tpu.memory_space<vmem>>, vector<128x128xbf16>
    %cst = arith.constant dense<0.000000e+00> : vector<16x128xf32>
    %3 = tpu.matmul %1, %2, %cst {dimension_numbers = #tpu.dot_dimension_numbers<[1], [1], [0], [0], [0, 0, 1, 0], [], []>} : vector<16x128xbf16>, vector<128x128xbf16>, vector<16x128xf32> -> vector<16x128xf32>
    %c0_3 = arith.constant 0 : index
    %c0_4 = arith.constant 0 : index
    %4 = vector.load %arg3[%c0_3, %c0_4] : memref<1x128xf32, #tpu.memory_space<vmem>>, vector<1x128xf32>
    %5 = vector.broadcast %4 : vector<1x128xf32> to vector<16x128xf32>
    %6 = arith.addf %3, %5 : vector<16x128xf32>
    %cst_5 = arith.constant 0.000000e+00 : f32
    %7 = vector.broadcast %cst_5 : f32 to vector<16x128xf32>
    %8 = arith.maximumf %6, %7 : vector<16x128xf32>
    %9 = arith.addf %0, %8 : vector<16x128xf32>
    %cst_6 = arith.constant dense<0.000000e+00> : vector<16xf32>
    %10 = vector.multi_reduction <add>, %9, %cst_6 [1] : vector<16x128xf32> to vector<16xf32>
    %11 = vector.shape_cast %10 : vector<16xf32> to vector<16x1xf32>
    %cst_7 = arith.constant 3.125000e-02 : f32
    %12 = vector.broadcast %cst_7 : f32 to vector<16x1xf32>
    %13 = arith.mulf %11, %12 : vector<16x1xf32>
    %14 = vector.broadcast %13 : vector<16x1xf32> to vector<16x128xf32>
    %15 = arith.subf %9, %14 : vector<16x128xf32>
    %16 = tpu.iota {dimensions = array<i32: 1>} : vector<16x128xi32>
    %c32_i32 = arith.constant 32 : i32
    %17 = vector.broadcast %c32_i32 : i32 to vector<16x128xi32>
    %18 = arith.cmpi slt, %16, %17 : vector<16x128xi32>
    %cst_8 = arith.constant 0.000000e+00 : f32
    %19 = vector.broadcast %cst_8 : f32 to vector<16x128xf32>
    %20 = arith.select %18, %15, %19 : vector<16x128xi1>, vector<16x128xf32>
    %21 = arith.mulf %20, %20 : vector<16x128xf32>
    %cst_9 = arith.constant dense<0.000000e+00> : vector<16xf32>
    %22 = vector.multi_reduction <add>, %21, %cst_9 [1] : vector<16x128xf32> to vector<16xf32>
    %23 = vector.shape_cast %22 : vector<16xf32> to vector<16x1xf32>
    %cst_10 = arith.constant 3.125000e-02 : f32
    %24 = vector.broadcast %cst_10 : f32 to vector<16x1xf32>
    %25 = arith.mulf %23, %24 : vector<16x1xf32>
    %cst_11 = arith.constant 9.99999996E-13 : f32
    %26 = vector.broadcast %cst_11 : f32 to vector<16x1xf32>
    %27 = arith.addf %25, %26 : vector<16x1xf32>
    %28 = math.rsqrt %27 : vector<16x1xf32>
    %29 = vector.broadcast %28 : vector<16x1xf32> to vector<16x128xf32>
    %30 = arith.mulf %15, %29 : vector<16x128xf32>
    %c0_12 = arith.constant 0 : index
    %c0_13 = arith.constant 0 : index
    %31 = vector.load %arg4[%c0_12, %c0_13] : memref<1x128xf32, #tpu.memory_space<vmem>>, vector<1x128xf32>
    %32 = vector.broadcast %31 : vector<1x128xf32> to vector<16x128xf32>
    %33 = arith.mulf %30, %32 : vector<16x128xf32>
    %c0_14 = arith.constant 0 : index
    %c0_15 = arith.constant 0 : index
    %34 = vector.load %arg5[%c0_14, %c0_15] : memref<1x128xf32, #tpu.memory_space<vmem>>, vector<1x128xf32>
    %35 = vector.broadcast %34 : vector<1x128xf32> to vector<16x128xf32>
    %36 = arith.addf %33, %35 : vector<16x128xf32>
    %c0_16 = arith.constant 0 : index
    %c0_17 = arith.constant 0 : index
    %37 = vector.load %arg6[%c0_16, %c0_17] : memref<16x128xf32, #tpu.memory_space<vmem>>, vector<16x128xf32>
    tpu.vector_store %arg6[%c0_16, %c0_17], %36 {strides = array<i32>} : memref<16x128xf32, #tpu.memory_space<vmem>>, vector<16x128xf32>,
    return
  }
  func.func @transform_0(%arg0: i32) -> (i32, i32) {
    %c0_i32 = arith.constant 0 : i32
    %c0_i32_0 = arith.constant 0 : i32
    return %arg0, %c0_i32 : i32, i32
  }
  func.func @transform_1(%arg0: i32) -> (i32, i32) {
    %c0_i32 = arith.constant 0 : i32
    %c0_i32_0 = arith.constant 0 : i32
    %c0_i32_1 = arith.constant 0 : i32
    return %c0_i32, %c0_i32_0 : i32, i32
  }
  func.func @transform_2(%arg0: i32) -> (i32, i32) {
    %c0_i32 = arith.constant 0 : i32
    %c0_i32_0 = arith.constant 0 : i32
    %c0_i32_1 = arith.constant 0 : i32
    return %c0_i32, %c0_i32_0 : i32, i32
  }
  func.func @transform_3(%arg0: i32) -> (i32, i32) {
    %c0_i32 = arith.constant 0 : i32
    %c0_i32_0 = arith.constant 0 : i32
    %c0_i32_1 = arith.constant 0 : i32
    return %c0_i32, %c0_i32_0 : i32, i32
  }
  func.func @transform_4(%arg0: i32) -> (i32, i32) {
    %c0_i32 = arith.constant 0 : i32
    %c0_i32_0 = arith.constant 0 : i32
    %c0_i32_1 = arith.constant 0 : i32
    return %c0_i32, %c0_i32_0 : i32, i32
  }
  func.func @transform_5(%arg0: i32) -> (i32, i32) {
    %c0_i32 = arith.constant 0 : i32
    %c0_i32_0 = arith.constant 0 : i32
    return %arg0, %c0_i32 : i32, i32
  }
}

</mosaic_0001>

<llo_original>
// kernel: tpu_custom_call.1
$region0: #{tpu_custom_call.1}
  #allocation0 [shape = 'u32[]', space=smem, size = 0x4, offset = 0x4, fixed_abs, tag = 'smem constant byte address 0x4 - core index']
  #allocation1 [shape = 'u32[144,128]{1,0:T(1,128)}', space=vmem, size = 0x12000, scoped, tag = 'internal scratch']
  %s0 = inlined_call_operand.hbm [shape: f32[16,128], index: 0, kind: input, shape index: {}]
  %s1 = inlined_call_operand.hbm [shape: bf16[128,128], index: 1, kind: input, shape index: {}]
  %s2 = inlined_call_operand.vmem [shape: f32[1,128], index: 2, kind: input, shape index: {}]
  %s3 = inlined_call_operand.vmem [shape: f32[1,128], index: 3, kind: input, shape index: {}]
  %s4 = inlined_call_operand.vmem [shape: f32[1,128], index: 4, kind: input, shape index: {}]
  %s5 = inlined_call_operand.hbm [shape: f32[16,128], index: 5, kind: output, shape index: {}]
  %s6 = sld [smem:[#allocation0]]
  $region38: #{tpu_custom_call.1} parent=0
    _
  %s8 = ssub.s32 1, %s6
  %s9 = scalar_select 0, %s8, %s6
  $region1: #{tpu_custom_call.1} parent=0
    #allocation2 [shape = 'u8[8192]{0}', space=vmem, size = 0x2000, scoped, tag = 'input window, operand 0, single buffered']
    #allocation3 [shape = 's32[1]{0}', space=sflag, size = 0x4, scoped, tag = 'scoped memory for tpu_custom_call.1']
    #allocation4 [shape = 's32[1]{0}', space=sflag, size = 0x4, scoped, tag = 'scoped memory for tpu_custom_call.1']
    #allocation5 [shape = 'u8[32768]{0}', space=vmem, size = 0x8000, scoped, tag = 'input window, operand 1, single buffered']
    #allocation6 [shape = 's32[1]{0}', space=sflag, size = 0x4, scoped, tag = 'scoped memory for tpu_custom_call.1']
    #allocation7 [shape = 'u8[8192]{0}', space=vmem, size = 0x2000, scoped, tag = 'output window, operand 0, single buffered']
    %10 = vsyncpa [#allocation3], 0
    %11 = vsyncpa [#allocation6], 0
    %12 = vsyncpa [#allocation4], 0
    // Predicated region
    $region2: #{tpu_custom_call.1} parent=1 // pred_check
      _
    $region3: #{tpu_custom_call.1} parent=1 // pred_check_branch
      %14 = sbr.rel (0) target = $region5
    $region4: #{tpu_custom_call.1} parent=1 // pred_region
      %s16 = ssub.s32 256, 256
      %17 = vsyncadd [#allocation3], %s16
      %s18 = sshll.u32 [#allocation2], 4
      %s19 = int_to_ptr.vmem [resolvable:$true] %s18
      %24 = dma.hbm_to_vmem [thread:$0]  %s0, 256, %s19, [#allocation3], 128, 128, 8
    $region5: #{tpu_custom_call.1} parent=1 // pred_fallthru
      _
    // Predicated region
    $region6: #{tpu_custom_call.1} parent=1 // pred_check
      _
    $region7: #{tpu_custom_call.1} parent=1 // pred_check_branch
      %26 = sbr.rel (0) target = $region9
    $region8: #{tpu_custom_call.1} parent=1 // pred_region
      %s28 = ssub.s32 1024, 1024
      %29 = vsyncadd [#allocation6], %s28
      %s30 = sshll.u32 [#allocation5], 4
      %s31 = int_to_ptr.vmem [resolvable:$true] %s30
      %36 = dma.hbm_to_vmem [thread:$0]  %s1, 1024, %s31, [#allocation6], 64, 64, 4
    $region9: #{tpu_custom_call.1} parent=1 // pred_fallthru
      _
    // Predicated region
    $region10: #{tpu_custom_call.1} parent=1 // pred_check
      _
    $region11: #{tpu_custom_call.1} parent=1 // pred_check_branch
      %38 = sbr.rel (0) target = $region13
    $region12: #{tpu_custom_call.1} parent=1 // pred_region
      _
    $region13: #{tpu_custom_call.1} parent=1 // pred_fallthru
      _
    // Predicated region
    $region14: #{tpu_custom_call.1} parent=1 // pred_check
      _
    $region15: #{tpu_custom_call.1} parent=1 // pred_check_branch
      %40 = sbr.rel (0) target = $region17
    $region16: #{tpu_custom_call.1} parent=1 // pred_region
      _
    $region17: #{tpu_custom_call.1} parent=1 // pred_fallthru
      _
    // Predicated region
    $region18: #{tpu_custom_call.1} parent=1 // pred_check
      _
    $region19: #{tpu_custom_call.1} parent=1 // pred_check_branch
      %42 = sbr.rel (0) target = $region21
    $region20: #{tpu_custom_call.1} parent=1 // pred_region
      _
    $region21: #{tpu_custom_call.1} parent=1 // pred_fallthru
      _
    // Predicated region
    $region22: #{tpu_custom_call.1} parent=1 // pred_check
      _
    $region23: #{tpu_custom_call.1} parent=1 // pred_check_branch
      %44 = sbr.rel (0) target = $region25
    $region24: #{tpu_custom_call.1} parent=1 // pred_region
      %45 = dma.done [#allocation3], 256
    $region25: #{tpu_custom_call.1} parent=1 // pred_fallthru
      _
    // Predicated region
    $region26: #{tpu_custom_call.1} parent=1 // pred_check
      _
    $region27: #{tpu_custom_call.1} parent=1 // pred_check_branch
      %47 = sbr.rel (0) target = $region29
    $region28: #{tpu_custom_call.1} parent=1 // pred_region
      %48 = dma.done [#allocation6], 1024
    $region29: #{tpu_custom_call.1} parent=1 // pred_fallthru
      _
    %v50 = vld [vmem:[#allocation2] sm:$0xff]
    %v51 = vld [vmem:[#allocation2 + $0x8] sm:$0xff]
    %v52 = vpack.c.bf16 %v51, %v50
    %v53 = vld [vmem:[#allocation5] sm:$0xf]
    %v54 = vld [vmem:[#allocation5 + $0x4] sm:$0xf]
    %v55 = vld [vmem:[#allocation5 + $0x8] sm:$0xf]
    %v56 = vld [vmem:[#allocation5 + $0xc] sm:$0xf]
    %v57 = vld [vmem:[#allocation5 + $0x10] sm:$0xf]
    %v58 = vld [vmem:[#allocation5 + $0x14] sm:$0xf]
    %v59 = vld [vmem:[#allocation5 + $0x18] sm:$0xf]
    %v60 = vld [vmem:[#allocation5 + $0x1c] sm:$0xf]
    %v61 = vld [vmem:[#allocation5 + $0x20] sm:$0xf]
    %v62 = vld [vmem:[#allocation5 + $0x24] sm:$0xf]
    %v63 = vld [vmem:[#allocation5 + $0x28] sm:$0xf]
    %v64 = vld [vmem:[#allocation5 + $0x2c] sm:$0xf]
    %v65 = vld [vmem:[#allocation5 + $0x30] sm:$0xf]
    %v66 = vld [vmem:[#allocation5 + $0x34] sm:$0xf]
    %v67 = vld [vmem:[#allocation5 + $0x38] sm:$0xf]
    %v68 = vld [vmem:[#allocation5 + $0x3c] sm:$0xf]
    %v69 = vld [vmem:[%s2] sm:$0x1]
    %v71 = vlaneseq
    %v72 = vshrl.u32 %v71, 7
    %v73 = vsub.s32 0, %v72
    %v74 = vrot.slane %v69, %v73
    %v92 = vunpack.c.l.b16 %v53
    %v93 = vunpack.c.l.b16 %v54
    %v94 = vunpack.c.l.b16 %v55
    %v95 = vunpack.c.l.b16 %v56
    %v96 = vunpack.c.l.b16 %v57
    %v97 = vunpack.c.l.b16 %v58
    %v98 = vunpack.c.l.b16 %v59
    %v99 = vunpack.c.l.b16 %v60
    %v100 = vunpack.c.l.b16 %v61
    %v101 = vunpack.c.l.b16 %v62
    %v102 = vunpack.c.l.b16 %v63
    %v103 = vunpack.c.l.b16 %v64
    %v104 = vunpack.c.l.b16 %v65
    %v105 = vunpack.c.l.b16 %v66
    %v106 = vunpack.c.l.b16 %v67
    %v107 = vunpack.c.l.b16 %v68
    %v108 = vpack.c.b16 %v93, %v92
    %v109 = vpack.c.b16 %v95, %v94
    %v110 = vpack.c.b16 %v97, %v96
    %v111 = vpack.c.b16 %v99, %v98
    %v112 = vpack.c.b16 %v101, %v100
    %v113 = vpack.c.b16 %v103, %v102
    %v114 = vpack.c.b16 %v105, %v104
    %v115 = vpack.c.b16 %v107, %v106
    %124 = vmatprep.subr.bf16.mxu0 0
    %125 = vmatpush1.bf16.xpose.msra.mxu0 %v108
    %126 = vmatprep.subr.bf16.mxu0 0
    %127 = vmatpush1.bf16.xpose.msra.mxu0 %v109
    %128 = vmatprep.subr.bf16.mxu0 0
    %129 = vmatpush1.bf16.xpose.msra.mxu0 %v110
    %130 = vmatprep.subr.bf16.mxu0 0
    %131 = vmatpush1.bf16.xpose.msra.mxu0 %v111
    %132 = vmatprep.subr.bf16.mxu0 0
    %133 = vmatpush1.bf16.xpose.msra.mxu0 %v112
    %134 = vmatprep.subr.bf16.mxu0 0
    %135 = vmatpush1.bf16.xpose.msra.mxu0 %v113
    %136 = vmatprep.subr.bf16.mxu0 0
    %137 = vmatpush1.bf16.xpose.msra.mxu0 %v114
    %138 = vmatprep.subr.bf16.mxu0 0
    %139 = vmatpush1.bf16.xpose.msra.mxu0 %v115
    %140 = vmatprep.subr.bf16.mxu0 0
    %141 = vmatpush1.bf16.xpose.msra.mxu0 0
    %142 = vmatprep.subr.bf16.mxu0 0
    %143 = vmatpush1.bf16.xpose.msra.mxu0 0
    %144 = vmatprep.subr.bf16.mxu0 0
    %145 = vmatpush1.bf16.xpose.msra.mxu0 0
    %146 = vmatprep.subr.bf16.mxu0 0
    %147 = vmatpush1.bf16.xpose.msra.mxu0 0
    %148 = vmatprep.subr.bf16.mxu0 0
    %149 = vmatpush1.bf16.xpose.msra.mxu0 0
    %150 = vmatprep.subr.bf16.mxu0 0
    %151 = vmatpush1.bf16.xpose.msra.mxu0 0
    %152 = vmatprep.subr.bf16.mxu0 0
    %153 = vmatpush1.bf16.xpose.msra.mxu0 0
    %154 = vmatprep.subr.bf16.mxu0 0
    %155 = vmatpush1.bf16.xpose.msra.mxu0 0
    %156 = vmatprep.mubr.bf16.mxu0 0
    %157 = vmatmul.mubr.bf16.gmra.mrb[0].mxu0 %v52
    %v158 = vpop.f32.mrb[0].mxu0
    %v159 = vadd.f32 %v74, %v158
    %v160 = vpop.f32.mrb[0].mxu0
    %v161 = vpop.f32.mrb[0].mxu0
    %v162 = vadd.f32 %v74, %v161
    %v163 = vpop.f32.mrb[0].mxu0
    %164 = vdwg.mxu0
    %v165 = vmax.f32 %v159, 0.0
    %v166 = vmax.f32 %v162, 0.0
    %v167 = vadd.f32 %v50, %v165
    %v168 = vadd.f32 %v51, %v166
    %169 = vadd.xlane.f32.xlu0 %v167
    %v170 = vpop.xlane.xlu0 %169
    %171 = vadd.xlane.f32.xlu0 %v168
    %v172 = vpop.xlane.xlu0 %171
    %v173 = vmul.f32 %v170, 0.03125
    %v174 = vmul.f32 %v172, 0.03125
    %v175 = vsub.f32 %v167, %v173
    %v176 = vsub.f32 %v168, %v174
    %v177 = vlaneseq
    %v178 = vand.u32 %v177, 127
    %vm179 = vcmp.lt.s32.totalorder %v178, 32
    %v180 = vsel %vm179, %v175, 0.0
    %v181 = vsel %vm179, %v176, 0.0
    %v182 = vmul.f32 %v180, %v180
    %v183 = vmul.f32 %v181, %v181
    %184 = vadd.xlane.f32.xlu0 %v182
    %v185 = vpop.xlane.xlu0 %184
    %186 = vadd.xlane.f32.xlu0 %v183
    %v187 = vpop.xlane.xlu0 %186
    %v188 = vmul.f32 %v185, 0.03125
    %v189 = vmul.f32 %v187, 0.03125
    %v190 = vadd.f32 %v188, 1e-12
    %v191 = vadd.f32 %v189, 1e-12
    %v192 = vrsqrt.pop %v190
    %v193 = vrsqrt.pop %v191
    %v194 = vmul.f32 %v175, %v192
    %v195 = vmul.f32 %v176, %v193
    %v196 = vld [vmem:[%s3] sm:$0x1]
    %v198 = vlaneseq
    %v199 = vshrl.u32 %v198, 7
    %v200 = vsub.s32 0, %v199
    %v201 = vrot.slane %v196, %v200
    %v203 = vmul.f32 %v194, %v201
    %v204 = vmul.f32 %v195, %v201
    %v205 = vld [vmem:[%s4] sm:$0x1]
    %v207 = vlaneseq
    %v208 = vshrl.u32 %v207, 7
    %v209 = vsub.s32 0, %v208
    %v210 = vrot.slane %v205, %v209
    %v212 = vadd.f32 %v203, %v210
    %v213 = vadd.f32 %v204, %v210
    %214 = vst [vmem:[#allocation7] sm:$0xff] %v212
    %215 = vst [vmem:[#allocation7 + $0x8] sm:$0xff] %v213
    // Predicated region
    $region30: #{tpu_custom_call.1} parent=1 // pred_check
      _
    $region31: #{tpu_custom_call.1} parent=1 // pred_check_branch
      %217 = sbr.rel (0) target = $region33
    $region32: #{tpu_custom_call.1} parent=1 // pred_region
      %s219 = ssub.s32 256, 256
      %220 = vsyncadd [#allocation4], %s219
      %s221 = sshll.u32 [#allocation7], 4
      %s222 = int_to_ptr.vmem [resolvable:$true] %s221
      %227 = dma.vmem_to_hbm [thread:$0]  %s222, 256, %s5, [#allocation4], 128, 128, 8
    $region33: #{tpu_custom_call.1} parent=1 // pred_fallthru
      _
    // Predicated region
    $region34: #{tpu_custom_call.1} parent=1 // pred_check
      _
    $region35: #{tpu_custom_call.1} parent=1 // pred_check_branch
      %229 = sbr.rel (0) target = $region37
    $region36: #{tpu_custom_call.1} parent=1 // pred_region
      %230 = dma.done [#allocation4], 256
    $region37: #{tpu_custom_call.1} parent=1 // pred_fallthru
      _
    %231 = vsyncpa [#allocation3], 1
    %232 = vsyncpa [#allocation6], 1
    %233 = vsyncpa [#allocation4], 1

</llo_original>
